<compile_context>
chip_gen: v6e
topology: v6e:2x2x1
jax: 0.10.0
libtpu: 0.0.40
codegen_flags: <defaults>
</compile_context>

<pallas_src>
import math
import numpy as np

import jax
import jax.numpy as jnp
from jax.experimental import pallas as pl
from jax.experimental.pallas import tpu as pltpu

OUT_FREQ = 16000.0
NUM_HARMONICS = 7
NOISE_STD = 0.003
AMPLITUDE = 0.1
H = NUM_HARMONICS + 1            # harmonic indices 1..8
_TWO_PI = 2.0 * math.pi
_PAD_SENTINEL = -1.0e4           # exp(-1e4) == 0 in f32 -> padded frames add 0 phase


def _round_up(x, m):
    return ((x + m - 1) // m) * m


# ------------------------------- Pallas kernel ------------------------------ #
def _source_kernel(aw_ref, sc_ref,                    # SMEM scalar prefetch: (H,), (2,)
                   logf0_ref, noise_ref, phase_ref,   # VMEM blocks
                   voiced_ref,                        # output block (TB, TL)
                   carry_ref):                        # VMEM scratch (TB, 1)
    l = pl.program_id(1)

    @pl.when(l == 0)
    def _():
        carry_ref[...] = jnp.zeros_like(carry_ref)

    # Per-frame phase increment; padded frames hold a -1e4 sentinel -> exp == 0.
    x = (_TWO_PI / OUT_FREQ) * jnp.exp(logf0_ref[...])           # (TB, TL)
    tb, tl = x.shape

    # Inclusive prefix sum along the lane (time) axis: Hillis-Steele doubling
    # built from XLU rotations + a lane-index mask (no concat/slice temporaries).
    lane = jax.lax.broadcasted_iota(jnp.int32, (tb, tl), 1)      # hoisted once
    s = 1
    while s < tl:
        rolled = pltpu.roll(x, s, 1)                             # rolled[:, i] = x[:, i-s]
        x = x + jnp.where(lane >= s, rolled, 0.0)
        s *= 2
    base = carry_ref[...] + x                                    # (TB, TL)

    # Carry the running base phase into the next time tile (mod 2*pi keeps it small).
    last = base[:, tl - 1:tl]
    carry_ref[...] = last - _TWO_PI * jnp.floor(last / _TWO_PI)

    # sum_h (A*w[h]) * sin(h*base + phase) via the Chebyshev recurrence:
    #   s_{h+1} = 2*cos(base)*s_h - s_{h-1};  s_0 = sin(phase), s_1 = sin(base+phase)
    phase = phase_ref[...]                                       # (TB, 1)
    cb2 = 2.0 * jnp.cos(base)
    s_prev = jnp.sin(phase)                                      # (TB, 1) -> nearly free
    s_cur = jnp.sin(base + phase)
    acc = aw_ref[0] * s_cur
    for h in range(1, H):
        s_next = cb2 * s_cur - s_prev
        acc = acc + aw_ref[h] * s_next
        s_prev, s_cur = s_cur, s_next

    # voiced = tanh( sum_h A*w[h]*sin_h + NOISE_STD*sum(w)*noise + bias )
    voiced_ref[...] = jnp.tanh(acc + sc_ref[0] * noise_ref[...] + sc_ref[1])


def source_pallas(aw, scal, logf0_pad, noise_pad, phase_col, *, tb, tl):
    Bp, Lp = logf0_pad.shape
    grid = (Bp // tb, Lp // tl)

    def tile_map(b, l, aw_ref, sc_ref):
        return (b, l)

    def row_map(b, l, aw_ref, sc_ref):
        return (b, 0)

    return pl.pallas_call(
        _source_kernel,
        out_shape=jax.ShapeDtypeStruct((Bp, Lp), jnp.float32),
        grid_spec=pltpu.PrefetchScalarGridSpec(
            num_scalar_prefetch=2,
            grid=grid,
            in_specs=[
                pl.BlockSpec((tb, tl), tile_map),    # padded log f0 (with sentinel)
                pl.BlockSpec((tb, tl), tile_map),    # padded noise
                pl.BlockSpec((tb, 1), row_map),      # per-row init phase
            ],
            out_specs=pl.BlockSpec((tb, tl), tile_map),
            scratch_shapes=[pltpu.VMEM((tb, 1), jnp.float32)],
        ),
        compiler_params=pltpu.CompilerParams(
            dimension_semantics=("parallel", "arbitrary")),
    )(aw, scal, logf0_pad, noise_pad, phase_col)


# ------------------------- packed <-> padded plumbing ----------------------- #
def pack_info(batch_sizes):
    """batch_sizes follows torch PackedSequence convention (descending)."""
    batch_sizes = np.asarray(batch_sizes, dtype=np.int64)
    T = batch_sizes.shape[0]
    B = int(batch_sizes[0])
    offsets = np.concatenate([[0], np.cumsum(batch_sizes)[:-1]])
    pad_idx = np.zeros((B, T), dtype=np.int32)
    mask = np.zeros((B, T), dtype=np.float32)
    pack_rows, pack_cols = [], []
    for t in range(T):
        for bb in range(int(batch_sizes[t])):
            pad_idx[bb, t] = int(offsets[t] + bb)
            mask[bb, t] = 1.0
            pack_rows.append(bb)
            pack_cols.append(t)
    return (pad_idx, mask,
            np.asarray(pack_rows, np.int32), np.asarray(pack_cols, np.int32))


def source_forward(log_f0, standard_noise, init_phase, weight, bias, batch_sizes,
                   *, tl_target=512):
    """Equivalent of Source.forward; RNG draws passed in explicitly."""
    pad_idx, mask_np, pr, pc = pack_info(batch_sizes)
    B, T = mask_np.shape

    # Time tile: power-of-two multiple of 128, capped near tl_target.
    tl = 128
    while tl < min(max(tl_target, 128), _round_up(T, 128)):
        tl *= 2
    L_pad = _round_up(T, tl)

    # Batch tile: as large as possible, but keep >= 2 batch tiles so the
    # "parallel" batch axis actually shards across v7x's two TensorCores.
    tb = min(_round_up(B, 8), 128)
    if -(-B // tb) < 2:
        half = _round_up((tb + 1) // 2, 8)
        if half < tb:
            tb = half
    B_pad = max(_round_up(B, tb), 2 * tb)

    pad_idx_p = np.zeros((B_pad, L_pad), np.int32)
    valid_p = np.zeros((B_pad, L_pad), np.bool_)
    pad_idx_p[:B, :T] = pad_idx
    valid_p[:B, :T] = mask_np > 0.0
    valid = jnp.asarray(valid_p)

    # Padded log-f0 positions carry a large negative sentinel (exp -> 0), so the
    # kernel needs no mask stream.  Padded noise only touches discarded outputs.
    logf0_pad = jnp.where(valid, log_f0[pad_idx_p], _PAD_SENTINEL).astype(jnp.float32)
    noise_pad = standard_noise[pad_idx_p].astype(jnp.float32)

    phase_col = jnp.zeros((B_pad, 1), jnp.float32)
    phase_col = phase_col.at[:B, 0].set(init_phase.astype(jnp.float32))

    # Fold constants into the prefetched SMEM scalars.
    w = weight.reshape(H).astype(jnp.float32)
    aw = (AMPLITUDE * w).astype(jnp.float32)                         # (H,)
    scal = jnp.stack([NOISE_STD * jnp.sum(w),
                      bias.reshape(1)[0]]).astype(jnp.float32)       # (2,)

    voiced_pad = source_pallas(aw, scal, logf0_pad, noise_pad, phase_col,
                               tb=tb, tl=tl)

    # pack back to flat (sum(seq_len),) order, matching pack_padded_sequence.
    voiced = voiced_pad[pr, pc]
    # voiceless requires zero kernel work: scale the packed noise in plain JAX.
    voiceless = (AMPLITUDE / 3.0) * standard_noise
    return voiced, voiceless


# ----------------------------- pure-JAX reference --------------------------- #
def source_reference(log_f0, standard_noise, init_phase, weight, bias, batch_sizes):
    pad_idx, mask_np, pr, pc = pack_info(batch_sizes)
    mask = jnp.asarray(mask_np)
    f0 = jnp.exp(log_f0[pad_idx]) * mask
    harm = jnp.arange(1, H + 1, dtype=jnp.float32)
    freqs = 2.0 * math.pi * f0[:, :, None] * harm[None, None, :] / OUT_FREQ
    angle = jnp.cumsum(freqs, axis=1) + init_phase[:, None, None]
    noise_pad = standard_noise[pad_idx] * mask
    harmonics = AMPLITUDE * jnp.sin(angle) + NOISE_STD * noise_pad[:, :, None]
    voiced_pad = jnp.tanh(jnp.sum(harmonics * weight[None, None, :], axis=-1) + bias[0])
    voiced = voiced_pad[pr, pc]
    voiceless = (AMPLITUDE / 3.0) * standard_noise
    return voiced, voiceless


# ------------------------------------ main ---------------------------------- #
if __name__ == "__main__":
    key = jax.random.PRNGKey(0)
    _, _, _, k4, k5 = jax.random.split(key, 5)

    bound = 1.0 / math.sqrt(H)
    weight = jax.random.uniform(k4, (H,), jnp.float32, minval=-bound, maxval=bound)
    bias = jax.random.uniform(k5, (1,), jnp.float32, minval=-bound, maxval=bound)

    def run_case(batch_sizes, tl_target, rtol, atol):
        T_total = int(sum(batch_sizes))
        B = int(batch_sizes[0])
        kk1, kk2, kk3 = jax.random.split(jax.random.fold_in(key, T_total), 3)
        log_f0 = jax.random.normal(kk1, (T_total,), jnp.float32) * 0.1 + jnp.log(120.0)
        standard_noise = jax.random.normal(kk2, (T_total,), jnp.float32)
        init_phase = (2.0 * jax.random.uniform(kk3, (B,), jnp.float32) - 1.0) * math.pi

        voiced, voiceless = source_forward(
            log_f0, standard_noise, init_phase, weight, bias, batch_sizes,
            tl_target=tl_target)
        jax.block_until_ready((voiced, voiceless))

        v_ref, vl_ref = source_reference(
            log_f0, standard_noise, init_phase, weight, bias, batch_sizes)
        np.testing.assert_allclose(np.asarray(voiced), np.asarray(v_ref),
                                   rtol=rtol, atol=atol)
        np.testing.assert_allclose(np.asarray(voiceless), np.asarray(vl_ref),
                                   rtol=rtol, atol=atol)
        assert voiced.shape == (T_total,) and voiceless.shape == (T_total,)

    # Case 1: B=2 sequences of lengths [8, 6] -> single time tile (tl=128),
    # two 8-row batch tiles (padded) exercising the parallel batch axis.
    run_case([2, 2, 2, 2, 2, 2, 1, 1], tl_target=1024, rtol=1e-5, atol=1e-5)
    # Case 2: B=2, lengths [200, 160], tl=128 -> two sequential time tiles,
    # exercising the carried running-phase scratch across the "arbitrary" axis.
    run_case([2] * 160 + [1] * 40, tl_target=128, rtol=1e-4, atol=1e-4)
    # Case 3: B=2, lengths [1000, 1000], default tl=512 -> long roll-based scans
    # (shifts up to 256) plus the cross-tile carry; looser tol for cumsum drift.
    run_case([2] * 1000, tl_target=512, rtol=5e-3, atol=5e-3)

    print("KERNEL_OK")
</pallas_src>

<mosaic_0001>
module attributes {stable_mosaic.version = 11 : i64} {
  func.func @_source_kernel(%arg0: i32, %arg1: i32, %arg2: memref<8xf32, #tpu.memory_space<smem>>, %arg3: memref<2xf32, #tpu.memory_space<smem>>, %arg4: memref<8x128xf32, #tpu.memory_space<vmem>>, %arg5: memref<8x128xf32, #tpu.memory_space<vmem>>, %arg6: memref<8x1xf32, #tpu.memory_space<vmem>>, %arg7: memref<8x128xf32, #tpu.memory_space<vmem>>, %arg8: memref<8x1xf32, #tpu.memory_space<vmem>>) attributes {dimension_semantics = [#tpu.dimension_semantics<parallel>, #tpu.dimension_semantics<arbitrary>], iteration_bounds = array<i64: 2, 1>, scalar_prefetch = 2 : i64, scratch_operands = 1 : i64, tpu.core_type = #tpu.core_type<tc>, window_params = [{transform_indices = @transform_0, window_bounds = array<i64: 8, 128>}, {transform_indices = @transform_1, window_bounds = array<i64: 8, 128>}, {transform_indices = @transform_2, window_bounds = array<i64: 8, 1>}, {transform_indices = @transform_3, window_bounds = array<i64: 8, 128>}]} {
    %c0_i32 = arith.constant 0 : i32
    %0 = arith.cmpi eq, %arg1, %c0_i32 : i32
    %1 = arith.extui %0 : i1 to i32
    %c0_i32_0 = arith.constant 0 : i32
    %2 = arith.cmpi ne, %1, %c0_i32_0 : i32
    scf.if %2 {
      %cst_32 = arith.constant 0.000000e+00 : f32
      %125 = vector.broadcast %cst_32 : f32 to vector<8x1xf32>
      %c0_33 = arith.constant 0 : index
      %c0_34 = arith.constant 0 : index
      %126 = vector.load %arg8[%c0_33, %c0_34] : memref<8x1xf32, #tpu.memory_space<vmem>>, vector<8x1xf32>
      tpu.vector_store %arg8[%c0_33, %c0_34], %125 {strides = array<i32>} : memref<8x1xf32, #tpu.memory_space<vmem>>, vector<8x1xf32>,
    } else {
    }
    %c0 = arith.constant 0 : index
    %c0_1 = arith.constant 0 : index
    %3 = vector.load %arg4[%c0, %c0_1] : memref<8x128xf32, #tpu.memory_space<vmem>>, vector<8x128xf32>
    %4 = math.exp %3 : vector<8x128xf32>
    %cst = arith.constant 3.9269909E-4 : f32
    %5 = vector.broadcast %cst : f32 to vector<8x128xf32>
    %6 = arith.mulf %5, %4 : vector<8x128xf32>
    %7 = tpu.iota {dimensions = array<i32: 1>} : vector<8x128xi32>
    %c1_i32 = arith.constant 1 : i32
    %8 = tpu.dynamic_rotate %6 by %c1_i32 dim 1 : vector<8x128xf32>, i32 -> vector<8x128xf32>
    %c1_i32_2 = arith.constant 1 : i32
    %9 = vector.broadcast %c1_i32_2 : i32 to vector<8x128xi32>
    %10 = arith.cmpi sge, %7, %9 : vector<8x128xi32>
    %cst_3 = arith.constant 0.000000e+00 : f32
    %11 = vector.broadcast %cst_3 : f32 to vector<8x128xf32>
    %12 = arith.select %10, %8, %11 : vector<8x128xi1>, vector<8x128xf32>
    %13 = arith.addf %6, %12 : vector<8x128xf32>
    %c2_i32 = arith.constant 2 : i32
    %14 = tpu.dynamic_rotate %13 by %c2_i32 dim 1 : vector<8x128xf32>, i32 -> vector<8x128xf32>
    %c2_i32_4 = arith.constant 2 : i32
    %15 = vector.broadcast %c2_i32_4 : i32 to vector<8x128xi32>
    %16 = arith.cmpi sge, %7, %15 : vector<8x128xi32>
    %cst_5 = arith.constant 0.000000e+00 : f32
    %17 = vector.broadcast %cst_5 : f32 to vector<8x128xf32>
    %18 = arith.select %16, %14, %17 : vector<8x128xi1>, vector<8x128xf32>
    %19 = arith.addf %13, %18 : vector<8x128xf32>
    %c4_i32 = arith.constant 4 : i32
    %20 = tpu.dynamic_rotate %19 by %c4_i32 dim 1 : vector<8x128xf32>, i32 -> vector<8x128xf32>
    %c4_i32_6 = arith.constant 4 : i32
    %21 = vector.broadcast %c4_i32_6 : i32 to vector<8x128xi32>
    %22 = arith.cmpi sge, %7, %21 : vector<8x128xi32>
    %cst_7 = arith.constant 0.000000e+00 : f32
    %23 = vector.broadcast %cst_7 : f32 to vector<8x128xf32>
    %24 = arith.select %22, %20, %23 : vector<8x128xi1>, vector<8x128xf32>
    %25 = arith.addf %19, %24 : vector<8x128xf32>
    %c8_i32 = arith.constant 8 : i32
    %26 = tpu.dynamic_rotate %25 by %c8_i32 dim 1 : vector<8x128xf32>, i32 -> vector<8x128xf32>
    %c8_i32_8 = arith.constant 8 : i32
    %27 = vector.broadcast %c8_i32_8 : i32 to vector<8x128xi32>
    %28 = arith.cmpi sge, %7, %27 : vector<8x128xi32>
    %cst_9 = arith.constant 0.000000e+00 : f32
    %29 = vector.broadcast %cst_9 : f32 to vector<8x128xf32>
    %30 = arith.select %28, %26, %29 : vector<8x128xi1>, vector<8x128xf32>
    %31 = arith.addf %25, %30 : vector<8x128xf32>
    %c16_i32 = arith.constant 16 : i32
    %32 = tpu.dynamic_rotate %31 by %c16_i32 dim 1 : vector<8x128xf32>, i32 -> vector<8x128xf32>
    %c16_i32_10 = arith.constant 16 : i32
    %33 = vector.broadcast %c16_i32_10 : i32 to vector<8x128xi32>
    %34 = arith.cmpi sge, %7, %33 : vector<8x128xi32>
    %cst_11 = arith.constant 0.000000e+00 : f32
    %35 = vector.broadcast %cst_11 : f32 to vector<8x128xf32>
    %36 = arith.select %34, %32, %35 : vector<8x128xi1>, vector<8x128xf32>
    %37 = arith.addf %31, %36 : vector<8x128xf32>
    %c32_i32 = arith.constant 32 : i32
    %38 = tpu.dynamic_rotate %37 by %c32_i32 dim 1 : vector<8x128xf32>, i32 -> vector<8x128xf32>
    %c32_i32_12 = arith.constant 32 : i32
    %39 = vector.broadcast %c32_i32_12 : i32 to vector<8x128xi32>
    %40 = arith.cmpi sge, %7, %39 : vector<8x128xi32>
    %cst_13 = arith.constant 0.000000e+00 : f32
    %41 = vector.broadcast %cst_13 : f32 to vector<8x128xf32>
    %42 = arith.select %40, %38, %41 : vector<8x128xi1>, vector<8x128xf32>
    %43 = arith.addf %37, %42 : vector<8x128xf32>
    %c64_i32 = arith.constant 64 : i32
    %44 = tpu.dynamic_rotate %43 by %c64_i32 dim 1 : vector<8x128xf32>, i32 -> vector<8x128xf32>
    %c64_i32_14 = arith.constant 64 : i32
    %45 = vector.broadcast %c64_i32_14 : i32 to vector<8x128xi32>
    %46 = arith.cmpi sge, %7, %45 : vector<8x128xi32>
    %cst_15 = arith.constant 0.000000e+00 : f32
    %47 = vector.broadcast %cst_15 : f32 to vector<8x128xf32>
    %48 = arith.select %46, %44, %47 : vector<8x128xi1>, vector<8x128xf32>
    %49 = arith.addf %43, %48 : vector<8x128xf32>
    %c0_16 = arith.constant 0 : index
    %c0_17 = arith.constant 0 : index
    %50 = vector.load %arg8[%c0_16, %c0_17] : memref<8x1xf32, #tpu.memory_space<vmem>>, vector<8x1xf32>
    %51 = vector.broadcast %50 : vector<8x1xf32> to vector<8x128xf32>
    %52 = arith.addf %51, %49 : vector<8x128xf32>
    %53 = vector.extract_strided_slice %52 {offsets = [0, 127], sizes = [8, 1], strides = [1, 1]} : vector<8x128xf32> to vector<8x1xf32>
    %cst_18 = arith.constant 6.28318548 : f32
    %54 = vector.broadcast %cst_18 : f32 to vector<8x1xf32>
    %55 = arith.divf %53, %54 : vector<8x1xf32>
    %56 = math.floor %55 : vector<8x1xf32>
    %cst_19 = arith.constant 6.28318548 : f32
    %57 = vector.broadcast %cst_19 : f32 to vector<8x1xf32>
    %58 = arith.mulf %57, %56 : vector<8x1xf32>
    %59 = arith.subf %53, %58 : vector<8x1xf32>
    %c0_20 = arith.constant 0 : index
    %c0_21 = arith.constant 0 : index
    %60 = vector.load %arg8[%c0_20, %c0_21] : memref<8x1xf32, #tpu.memory_space<vmem>>, vector<8x1xf32>
    tpu.vector_store %arg8[%c0_20, %c0_21], %59 {strides = array<i32>} : memref<8x1xf32, #tpu.memory_space<vmem>>, vector<8x1xf32>,
    %c0_22 = arith.constant 0 : index
    %c0_23 = arith.constant 0 : index
    %61 = vector.load %arg6[%c0_22, %c0_23] : memref<8x1xf32, #tpu.memory_space<vmem>>, vector<8x1xf32>
    %62 = math.cos %52 : vector<8x128xf32>
    %cst_24 = arith.constant 2.000000e+00 : f32
    %63 = vector.broadcast %cst_24 : f32 to vector<8x128xf32>
    %64 = arith.mulf %63, %62 : vector<8x128xf32>
    %65 = math.sin %61 : vector<8x1xf32>
    %66 = vector.broadcast %61 : vector<8x1xf32> to vector<8x128xf32>
    %67 = arith.addf %52, %66 : vector<8x128xf32>
    %68 = math.sin %67 : vector<8x128xf32>
    %c0_25 = arith.constant 0 : index
    %69 = memref.load %arg2[%c0_25] : memref<8xf32, #tpu.memory_space<smem>>
    %70 = vector.broadcast %69 : f32 to vector<8x128xf32>
    %71 = arith.mulf %70, %68 : vector<8x128xf32>
    %72 = arith.mulf %64, %68 : vector<8x128xf32>
    %73 = vector.broadcast %65 : vector<8x1xf32> to vector<8x128xf32>
    %74 = arith.subf %72, %73 : vector<8x128xf32>
    %c1 = arith.constant 1 : index
    %75 = memref.load %arg2[%c1] : memref<8xf32, #tpu.memory_space<smem>>
    %76 = vector.broadcast %75 : f32 to vector<8x128xf32>
    %77 = arith.mulf %76, %74 : vector<8x128xf32>
    %78 = arith.addf %71, %77 : vector<8x128xf32>
    %79 = arith.mulf %64, %74 : vector<8x128xf32>
    %80 = arith.subf %79, %68 : vector<8x128xf32>
    %c2 = arith.constant 2 : index
    %81 = memref.load %arg2[%c2] : memref<8xf32, #tpu.memory_space<smem>>
    %82 = vector.broadcast %81 : f32 to vector<8x128xf32>
    %83 = arith.mulf %82, %80 : vector<8x128xf32>
    %84 = arith.addf %78, %83 : vector<8x128xf32>
    %85 = arith.mulf %64, %80 : vector<8x128xf32>
    %86 = arith.subf %85, %74 : vector<8x128xf32>
    %c3 = arith.constant 3 : index
    %87 = memref.load %arg2[%c3] : memref<8xf32, #tpu.memory_space<smem>>
    %88 = vector.broadcast %87 : f32 to vector<8x128xf32>
    %89 = arith.mulf %88, %86 : vector<8x128xf32>
    %90 = arith.addf %84, %89 : vector<8x128xf32>
    %91 = arith.mulf %64, %86 : vector<8x128xf32>
    %92 = arith.subf %91, %80 : vector<8x128xf32>
    %c4 = arith.constant 4 : index
    %93 = memref.load %arg2[%c4] : memref<8xf32, #tpu.memory_space<smem>>
    %94 = vector.broadcast %93 : f32 to vector<8x128xf32>
    %95 = arith.mulf %94, %92 : vector<8x128xf32>
    %96 = arith.addf %90, %95 : vector<8x128xf32>
    %97 = arith.mulf %64, %92 : vector<8x128xf32>
    %98 = arith.subf %97, %86 : vector<8x128xf32>
    %c5 = arith.constant 5 : index
    %99 = memref.load %arg2[%c5] : memref<8xf32, #tpu.memory_space<smem>>
    %100 = vector.broadcast %99 : f32 to vector<8x128xf32>
    %101 = arith.mulf %100, %98 : vector<8x128xf32>
    %102 = arith.addf %96, %101 : vector<8x128xf32>
    %103 = arith.mulf %64, %98 : vector<8x128xf32>
    %104 = arith.subf %103, %92 : vector<8x128xf32>
    %c6 = arith.constant 6 : index
    %105 = memref.load %arg2[%c6] : memref<8xf32, #tpu.memory_space<smem>>
    %106 = vector.broadcast %105 : f32 to vector<8x128xf32>
    %107 = arith.mulf %106, %104 : vector<8x128xf32>
    %108 = arith.addf %102, %107 : vector<8x128xf32>
    %109 = arith.mulf %64, %104 : vector<8x128xf32>
    %110 = arith.subf %109, %98 : vector<8x128xf32>
    %c7 = arith.constant 7 : index
    %111 = memref.load %arg2[%c7] : memref<8xf32, #tpu.memory_space<smem>>
    %112 = vector.broadcast %111 : f32 to vector<8x128xf32>
    %113 = arith.mulf %112, %110 : vector<8x128xf32>
    %114 = arith.addf %108, %113 : vector<8x128xf32>
    %c0_26 = arith.constant 0 : index
    %115 = memref.load %arg3[%c0_26] : memref<2xf32, #tpu.memory_space<smem>>
    %c0_27 = arith.constant 0 : index
    %c0_28 = arith.constant 0 : index
    %116 = vector.load %arg5[%c0_27, %c0_28] : memref<8x128xf32, #tpu.memory_space<vmem>>, vector<8x128xf32>
    %117 = vector.broadcast %115 : f32 to vector<8x128xf32>
    %118 = arith.mulf %117, %116 : vector<8x128xf32>
    %119 = arith.addf %114, %118 : vector<8x128xf32>
    %c1_29 = arith.constant 1 : index
    %120 = memref.load %arg3[%c1_29] : memref<2xf32, #tpu.memory_space<smem>>
    %121 = vector.broadcast %120 : f32 to vector<8x128xf32>
    %122 = arith.addf %119, %121 : vector<8x128xf32>
    %123 = math.tanh %122 : vector<8x128xf32>
    %c0_30 = arith.constant 0 : index
    %c0_31 = arith.constant 0 : index
    %124 = vector.load %arg7[%c0_30, %c0_31] : memref<8x128xf32, #tpu.memory_space<vmem>>, vector<8x128xf32>
    tpu.vector_store %arg7[%c0_30, %c0_31], %123 {strides = array<i32>} : memref<8x128xf32, #tpu.memory_space<vmem>>, vector<8x128xf32>,
    return
  }
  func.func @transform_0(%arg0: i32, %arg1: i32, %arg2: memref<8xf32, #tpu.memory_space<smem>>, %arg3: memref<2xf32, #tpu.memory_space<smem>>) -> (i32, i32) {
    %c0_i32 = arith.constant 0 : i32
    return %arg0, %arg1 : i32, i32
  }
  func.func @transform_1(%arg0: i32, %arg1: i32, %arg2: memref<8xf32, #tpu.memory_space<smem>>, %arg3: memref<2xf32, #tpu.memory_space<smem>>) -> (i32, i32) {
    %c0_i32 = arith.constant 0 : i32
    return %arg0, %arg1 : i32, i32
  }
  func.func @transform_2(%arg0: i32, %arg1: i32, %arg2: memref<8xf32, #tpu.memory_space<smem>>, %arg3: memref<2xf32, #tpu.memory_space<smem>>) -> (i32, i32) {
    %c0_i32 = arith.constant 0 : i32
    %c0_i32_0 = arith.constant 0 : i32
    return %arg0, %c0_i32 : i32, i32
  }
  func.func @transform_3(%arg0: i32, %arg1: i32, %arg2: memref<8xf32, #tpu.memory_space<smem>>, %arg3: memref<2xf32, #tpu.memory_space<smem>>) -> (i32, i32) {
    %c0_i32 = arith.constant 0 : i32
    return %arg0, %arg1 : i32, i32
  }
}

</mosaic_0001>

<llo_original>
// kernel: tpu_custom_call.1
$region0: #{tpu_custom_call.1}
  #allocation0 [shape = 'u32[]', space=smem, size = 0x4, offset = 0x4, fixed_abs, tag = 'smem constant byte address 0x4 - core index']
  #allocation1 [shape = 'u32[144,128]{1,0:T(1,128)}', space=vmem, size = 0x12000, scoped, tag = 'internal scratch']
  #allocation2 [shape = 'f32[8,1]{1,0:T(8,128)}', space=vmem, size = 0x1000, scoped, tag = 'scratch operand']
  #allocation3 [shape = 's32[1]{0}', space=sflag, size = 0x4, scoped, tag = 'scoped memory for tpu_custom_call.1']
  #allocation4 [shape = 'u8[512]{0}', space=smem, size = 0x200, scoped, tag = 'prefetched SMEM operand 0']
  #allocation5 [shape = 'u8[512]{0}', space=smem, size = 0x200, scoped, tag = 'prefetched SMEM operand 1']
  %s0 = inlined_call_operand.vmem [shape: f32[8], index: 0, kind: input, shape index: {}]
  %s1 = inlined_call_operand.vmem [shape: f32[2], index: 1, kind: input, shape index: {}]
  %s2 = inlined_call_operand.vmem [shape: f32[16,128], index: 2, kind: input, shape index: {}]
  %s3 = inlined_call_operand.hbm [shape: f32[16,128], index: 3, kind: input, shape index: {}]
  %s4 = inlined_call_operand.vmem [shape: f32[16,1], index: 4, kind: input, shape index: {}]
  %s5 = inlined_call_operand.hbm [shape: f32[16,128], index: 5, kind: output, shape index: {}]
  %s6 = sld [smem:[#allocation0]]
  $region53: #{tpu_custom_call.1} parent=0
    _
  %s8 = ssub.s32 1, %s6
  %s9 = scalar_select 0, %s8, %s6
  %s10 = sshll.u32 %s0, 4
  %s11 = int_to_ptr.vmem [resolvable:$true] %s10
  %13 = dma.vmem_to_smem %s11, 16, [#allocation4], [#allocation3]
  %s14 = sshll.u32 %s1, 4
  %s15 = int_to_ptr.vmem [resolvable:$true] %s14
  %17 = dma.vmem_to_smem %s15, 16, [#allocation5], [#allocation3]
  %18 = dma.done [#allocation3], 32
  %19 = sfence
  $region1: #{tpu_custom_call.1} parent=0
    #allocation6 [shape = 'u8[8192]{0}', space=vmem, size = 0x2000, scoped, tag = 'input window, operand 3']
    #allocation7 [shape = 's32[2]{0}', space=sflag, size = 0x8, scoped, tag = 'scoped memory for tpu_custom_call.1']
    #allocation8 [shape = 's32[2]{0}', space=sflag, size = 0x8, scoped, tag = 'scoped memory for tpu_custom_call.1']
    #allocation9 [shape = 'u8[8192]{0}', space=vmem, size = 0x2000, scoped, tag = 'output window, operand 0']
    %20 = vsyncpa [#allocation7], 0
    %s21 = scalar_lea.sflag [#allocation7], 1
    %22 = vsyncpa %s21, 0
    %23 = vsyncpa [#allocation8], 0
    %s24 = scalar_lea.sflag [#allocation8], 1
    %25 = vsyncpa %s24, 0
    loop: start=0, step=1, limit=4
    $region2: #{tpu_custom_call.1} parent=1 // loop_pre_header
      _
    $region3: #{tpu_custom_call.1} parent=1 // loop_header
      %s27 = sphi 0, %s31
      %p28 = scmp.ge.s32.totalorder %s27, 4
      %s34 = sphi 0, %s46
      %s35 = sphi 0, %s42
      %s36 = sphi 0, %s34
      %s37 = sphi 0, %s35
      %s38 = sphi 0, %s36
      %s39 = sphi 0, %s37
      %s51 = sphi 0, %s53
      %s54 = sphi 0, %s51
      %s55 = sphi 0, %s54
      %s71 = sphi 0, %s55
      %s79 = sphi 0, %s81
      %s82 = sphi 0, %s79
      %s83 = sphi 0, %s82
      %s99 = sphi 0, %s83
      %s105 = sphi 0, %s107
      %s108 = sphi 0, %s105
      %s109 = sphi 0, %s108
      %s125 = sphi 0, %s109
      %s133 = sphi 0, %s135
      %s136 = sphi 0, %s133
      %s137 = sphi 0, %s136
      %s153 = sphi 0, %s137
    $region4: #{tpu_custom_call.1} parent=1 // loop_header_branch
      %30 = sbr.rel (%p28) target = $region8
    $region5: #{tpu_custom_call.1} parent=1 // loop_body
      %s32 = ssub.s32 %s27, 1
      %s33 = ssub.s32 %s27, 2
      %s40 = sadd.s32 1, %s35
      %p41 = scmp.ge.s32.totalorder %s40, 1
      %s42 = scalar_select %p41, 0, %s40
      %s43 = sadd.s32 1, %s34
      %s44 = scalar_select %p41, %s43, %s34
      %p45 = scmp.ge.s32.totalorder %s44, 2
      %s46 = scalar_select %p45, 0, %s44
      %s47 = ssub.s32 %s34, %s46
      %s48 = ssub.s32 %s35, %s42
      %s49 = sor.u32 %s47, %s48
      %p50 = scmp.eq.s32.totalorder %s49, 0
      %s52 = sadd.s32 %s51, 1
      %s53 = scalar_select %p50, %s51, %s52
      %p56 = pneg %p50
      %p57 = scmp.eq.s32.totalorder %s27, 1
      %p58 = por %p56, %p57
      %p59 = scmp.ne.s32.totalorder %s51, %s54
      %p60 = scmp.eq.s32.totalorder %s27, 0
      %p61 = por %p59, %p60
      %p62 = scmp.ne.s32.totalorder %s51, %s54
      %p63 = scmp.eq.s32.totalorder %s32, 1
      %p64 = por %p62, %p63
      %p65 = scmp.ne.s32.totalorder %s54, %s55
      %p66 = scmp.eq.s32.totalorder %s32, 0
      %p67 = por %p65, %p66
      %p68 = scmp.ne.s32.totalorder %s54, %s55
      %p69 = scmp.eq.s32.totalorder %s33, 1
      %p70 = por %p68, %p69
      %p72 = scmp.ne.s32.totalorder %s55, %s71
      %p73 = scmp.eq.s32.totalorder %s33, 0
      %p74 = por %p72, %p73
      %s75 = ssub.s32 %s34, %s46
      %s76 = ssub.s32 %s35, %s42
      %s77 = sor.u32 %s75, %s76
      %p78 = scmp.eq.s32.totalorder %s77, 0
      %s80 = sadd.s32 %s79, 1
      %s81 = scalar_select %p78, %s79, %s80
      %p84 = pneg %p78
      %p85 = scmp.eq.s32.totalorder %s27, 1
      %p86 = por %p84, %p85
      %p87 = scmp.ne.s32.totalorder %s79, %s82
      %p88 = scmp.eq.s32.totalorder %s27, 0
      %p89 = por %p87, %p88
      %p90 = scmp.ne.s32.totalorder %s79, %s82
      %p91 = scmp.eq.s32.totalorder %s32, 1
      %p92 = por %p90, %p91
      %p93 = scmp.ne.s32.totalorder %s82, %s83
      %p94 = scmp.eq.s32.totalorder %s32, 0
      %p95 = por %p93, %p94
      %p96 = scmp.ne.s32.totalorder %s82, %s83
      %p97 = scmp.eq.s32.totalorder %s33, 1
      %p98 = por %p96, %p97
      %p100 = scmp.ne.s32.totalorder %s83, %s99
      %p101 = scmp.eq.s32.totalorder %s33, 0
      %p102 = por %p100, %p101
      %s103 = ssub.s32 %s34, %s46
      %p104 = scmp.eq.s32.totalorder %s103, 0
      %s106 = sadd.s32 %s105, 1
      %s107 = scalar_select %p104, %s105, %s106
      %p110 = pneg %p104
      %p111 = scmp.eq.s32.totalorder %s27, 1
      %p112 = por %p110, %p111
      %p113 = scmp.ne.s32.totalorder %s105, %s108
      %p114 = scmp.eq.s32.totalorder %s27, 0
      %p115 = por %p113, %p114
      %p116 = scmp.ne.s32.totalorder %s105, %s108
      %p117 = scmp.eq.s32.totalorder %s32, 1
      %p118 = por %p116, %p117
      %p119 = scmp.ne.s32.totalorder %s108, %s109
      %p120 = scmp.eq.s32.totalorder %s32, 0
      %p121 = por %p119, %p120
      %p122 = scmp.ne.s32.totalorder %s108, %s109
      %p123 = scmp.eq.s32.totalorder %s33, 1
      %p124 = por %p122, %p123
      %p126 = scmp.ne.s32.totalorder %s109, %s125
      %p127 = scmp.eq.s32.totalorder %s33, 0
      %p128 = por %p126, %p127
      %s129 = ssub.s32 %s34, %s46
      %s130 = ssub.s32 %s35, %s42
      %s131 = sor.u32 %s129, %s130
      %p132 = scmp.eq.s32.totalorder %s131, 0
      %s134 = sadd.s32 %s133, 1
      %s135 = scalar_select %p132, %s133, %s134
      %p138 = pneg %p132
      %p139 = scmp.eq.s32.totalorder %s27, 1
      %p140 = por %p138, %p139
      %p141 = scmp.ne.s32.totalorder %s133, %s136
      %p142 = scmp.eq.s32.totalorder %s27, 0
      %p143 = por %p141, %p142
      %p144 = scmp.ne.s32.totalorder %s133, %s136
      %p145 = scmp.eq.s32.totalorder %s32, 1
      %p146 = por %p144, %p145
      %p147 = scmp.ne.s32.totalorder %s136, %s137
      %p148 = scmp.eq.s32.totalorder %s32, 0
      %p149 = por %p147, %p148
      %p150 = scmp.ne.s32.totalorder %s136, %s137
      %p151 = scmp.eq.s32.totalorder %s33, 1
      %p152 = por %p150, %p151
      %p154 = scmp.ne.s32.totalorder %s137, %s153
      %p155 = scmp.eq.s32.totalorder %s33, 0
      %p156 = por %p154, %p155
      %p157 = scmp.le.s32.totalorder 1, %s27
      %p158 = scmp.lt.s32.totalorder %s27, 3
      %p159 = pnand %p157, %p158
      %p160 = pneg %p159
      // Predicated region
      $region9: #{tpu_custom_call.1} parent=5 // pred_check
        _
      $region10: #{tpu_custom_call.1} parent=5 // pred_check_branch
        %162 = sbr.rel (%p159) target = $region12
      $region11: #{tpu_custom_call.1} parent=5 // pred_region
        %s163 = ssub.s32 %s27, 1
      $region12: #{tpu_custom_call.1} parent=5 // pred_fallthru
        _
      %p164 = scmp.lt.s32.totalorder %s27, 2
      // Predicated region
      $region13: #{tpu_custom_call.1} parent=5 // pred_check
        %p165 = pneg %p164
      $region14: #{tpu_custom_call.1} parent=5 // pred_check_branch
        %167 = sbr.rel (%p165) target = $region16
      $region15: #{tpu_custom_call.1} parent=5 // pred_region
        // Predicated region
        $region17: #{tpu_custom_call.1} parent=15 // pred_check
          %p168 = pneg %p61
        $region18: #{tpu_custom_call.1} parent=15 // pred_check_branch
          %170 = sbr.rel (%p168) target = $region20
        $region19: #{tpu_custom_call.1} parent=15 // pred_region
          %p171 = scmp.lt.s32.totalorder %s34, 1
          %s172 = scalar_select %p171, %s34, 1
          %p173 = scmp.lt.s32.totalorder %s35, 0
          %s174 = scalar_select %p173, %s35, 0
          %s175 = sadd.s32 %s174, %s172
          %s176 = smul.addr %s175, 8
          %s177 = scalar_lea.vmem %s2, %s176
        $region20: #{tpu_custom_call.1} parent=15 // pred_fallthru
          _
        // Predicated region
        $region21: #{tpu_custom_call.1} parent=15 // pred_check
          %p178 = pneg %p89
        $region22: #{tpu_custom_call.1} parent=15 // pred_check_branch
          %180 = sbr.rel (%p178) target = $region24
        $region23: #{tpu_custom_call.1} parent=15 // pred_region
          %s181 = sand.u32 %s79, 1
          %s182 = scalar_lea.sflag [#allocation7], %s181
          %s183 = sand.u32 %s79, 1
          %s184 = smul.addr %s183, 8
          %s185 = scalar_lea.vmem [#allocation6], %s184
          %s187 = ssub.s32 128, 128
          %188 = vsyncadd %s182, %s187
          %s189 = sadd.s32 %s35, %s34
          %s190 = smul.addr %s189, 128
          %s191 = scalar_lea.hbm %s3, %s190
          %s193 = sshll.u32 %s185, 4
          %s194 = int_to_ptr.vmem [resolvable:$true] %s193
          %196 = dma.hbm_to_vmem [thread:$0]  %s191, 128, %s194, %s182
        $region24: #{tpu_custom_call.1} parent=15 // pred_fallthru
          _
        // Predicated region
        $region25: #{tpu_custom_call.1} parent=15 // pred_check
          %p197 = pneg %p115
        $region26: #{tpu_custom_call.1} parent=15 // pred_check_branch
          %199 = sbr.rel (%p197) target = $region28
        $region27: #{tpu_custom_call.1} parent=15 // pred_region
          %p200 = scmp.lt.s32.totalorder %s34, 1
          %s201 = scalar_select %p200, %s34, 1
          %s202 = smul.addr %s201, 8
          %s203 = scalar_lea.vmem %s4, %s202
        $region28: #{tpu_custom_call.1} parent=15 // pred_fallthru
          _
      $region16: #{tpu_custom_call.1} parent=5 // pred_fallthru
        _
      %p204 = scmp.le.s32.totalorder 1, %s27
      %p205 = scmp.lt.s32.totalorder %s27, 3
      %p206 = pnand %p204, %p205
      %p207 = pneg %p206
      // Predicated region
      $region29: #{tpu_custom_call.1} parent=5 // pred_check
        _
      $region30: #{tpu_custom_call.1} parent=5 // pred_check_branch
        %209 = sbr.rel (%p206) target = $region32
      $region31: #{tpu_custom_call.1} parent=5 // pred_region
        %s210 = ssub.s32 %s27, 1
        %s211 = sand.u32 %s82, 1
        %s212 = scalar_lea.sflag [#allocation7], %s211
        %s213 = sand.u32 %s82, 1
        %s214 = smul.addr %s213, 8
        %s215 = scalar_lea.vmem [#allocation6], %s214
        // Predicated region
        $region33: #{tpu_custom_call.1} parent=31 // pred_check
          %p216 = pneg %p95
        $region34: #{tpu_custom_call.1} parent=31 // pred_check_branch
          %218 = sbr.rel (%p216) target = $region36
        $region35: #{tpu_custom_call.1} parent=31 // pred_region
          %219 = dma.done %s212, 128
        $region36: #{tpu_custom_call.1} parent=31 // pred_fallthru
          _
        %p220 = scmp.lt.s32.totalorder %s36, 1
        %s221 = scalar_select %p220, %s36, 1
        %p222 = scmp.lt.s32.totalorder %s37, 0
        %s223 = scalar_select %p222, %s37, 0
        %s224 = sadd.s32 %s223, %s221
        %s225 = smul.addr %s224, 8
        %s226 = scalar_lea.vmem %s2, %s225
        %p227 = pneg %p67
        %p228 = pneg %p64
        %s229 = sand.u32 %s82, 1
        %s230 = scalar_lea.sflag [#allocation7], %s229
        %s231 = sand.u32 %s82, 1
        %s232 = smul.addr %s231, 8
        %s233 = scalar_lea.vmem [#allocation6], %s232
        %p234 = pneg %p95
        %p235 = pneg %p92
        %p236 = scmp.lt.s32.totalorder %s36, 1
        %s237 = scalar_select %p236, %s36, 1
        %s238 = smul.addr %s237, 8
        %s239 = scalar_lea.vmem %s4, %s238
        %p240 = pneg %p121
        %p241 = pneg %p118
        %p242 = pneg %p149
        %p243 = pneg %p146
        %s244 = sand.u32 %s136, 1
        %s245 = scalar_lea.sflag [#allocation8], %s244
        %s246 = sand.u32 %s136, 1
        %s247 = smul.addr %s246, 8
        %s248 = scalar_lea.vmem [#allocation9], %s247
        %p249 = scmp.lt.s32.totalorder %s36, 1
        %s250 = scalar_select %p249, %s36, 1
        %p251 = scmp.lt.s32.totalorder %s37, 0
        %s252 = scalar_select %p251, %s37, 0
        %s253 = sadd.s32 %s252, %s250
        %s254 = smul.addr %s253, 8
        %s255 = scalar_lea.vmem %s2, %s254
        %p256 = scmp.lt.s32.totalorder %s36, 1
        %s257 = scalar_select %p256, %s36, 1
        %s258 = smul.addr %s257, 8
        %s259 = scalar_lea.vmem %s4, %s258
        %p260 = scmp.eq.s32.totalorder %s37, 0
        // Predicated region
        $region37: #{tpu_custom_call.1} parent=31 // pred_check
          %p261 = pneg %p260
        $region38: #{tpu_custom_call.1} parent=31 // pred_check_branch
          %263 = sbr.rel (%p261) target = $region40
        $region39: #{tpu_custom_call.1} parent=31 // pred_region
          %vm264 = vcmask 7168
          %265 = vst.msk [vmem:[#allocation2] sm:$0xff] %vm264, 0.0
        $region40: #{tpu_custom_call.1} parent=31 // pred_fallthru
          _
        %v266 = vld [vmem:[%s255] sm:$0xff]
        %v267 = vmul.f32 %v266, 1.442695
        %v268 = vpow.pop %v267
        %v269 = vmul.f32 %v268, 0.0003926991
        %v270 = vlaneseq
        %v271 = vand.u32 %v270, 127
        %272 = vrot.lane.b32.xlu0 %v269, 1
        %v273 = vpop.permute.xlu0 %272
        %vm274 = vcmp.ge.s32.totalorder %v271, 1
        %v275 = vsel %vm274, %v273, 0.0
        %v276 = vadd.f32 %v269, %v275
        %277 = vrot.lane.b32.xlu0 %v276, 2
        %v278 = vpop.permute.xlu0 %277
        %vm279 = vcmp.ge.s32.totalorder %v271, 2
        %v280 = vsel %vm279, %v278, 0.0
        %v281 = vadd.f32 %v276, %v280
        %282 = vrot.lane.b32.xlu0 %v281, 4
        %v283 = vpop.permute.xlu0 %282
        %vm284 = vcmp.ge.s32.totalorder %v271, 4
        %v285 = vsel %vm284, %v283, 0.0
        %v286 = vadd.f32 %v281, %v285
        %287 = vrot.lane.b32.xlu0 %v286, 8
        %v288 = vpop.permute.xlu0 %287
        %vm289 = vcmp.ge.s32.totalorder %v271, 8
        %v290 = vsel %vm289, %v288, 0.0
        %v291 = vadd.f32 %v286, %v290
        %292 = vrot.lane.b32.xlu0 %v291, 16
        %v293 = vpop.permute.xlu0 %292
        %vm294 = vcmp.ge.s32.totalorder %v271, 16
        %v295 = vsel %vm294, %v293, 0.0
        %v296 = vadd.f32 %v291, %v295
        %297 = vrot.lane.b32.xlu0 %v296, 32
        %v298 = vpop.permute.xlu0 %297
        %vm299 = vcmp.ge.s32.totalorder %v271, 32
        %v300 = vsel %vm299, %v298, 0.0
        %v301 = vadd.f32 %v296, %v300
        %302 = vrot.lane.b32.xlu0 %v301, 64
        %v303 = vpop.permute.xlu0 %302
        %vm304 = vcmp.ge.s32.totalorder %v271, 64
        %v305 = vsel %vm304, %v303, 0.0
        %v306 = vadd.f32 %v301, %v305
        %v307 = vld [vmem:[#allocation2] sm:$0xff]
        %309 = vset.pattern.permute.xlu0 0
        %310 = vperm.xlu0 %309, %v307
        %v311 = vpop.permute.xlu0 %310
        %v313 = vadd.f32 %v311, %v306
        %v314 = vrcp.pop 6.2831855
        %v315 = vmul.f32 %v313, %v314
        %v316 = vfloor.f32 %v315
        %v317 = vmul.f32 %v316, 6.2831855
        %v318 = vsub.f32 %v313, %v317
        %320 = vrot.lane.b32.xlu0 %v318, 1
        %v321 = vpop.permute.xlu0 %320
        %vm323 = vcmask 7168
        %324 = vst.msk [vmem:[#allocation2] sm:$0xff] %vm323, %v321
        %v325 = vld [vmem:[%s259] sm:$0xff]
        %v326 = vand.u32 2147483647, %v313
        %vm327 = vcmp.le.f32.partialorder %v326, 0.7853982
        %vm328 = vcmp.lt.s32.totalorder %v313, 0
        %v329 = vand.u32 %v313, 2139095040
        %v330 = vshrl.u32 %v329, 23
        %v331 = vsub.s32 %v330, 127
        %v332 = vand.u32 2147483647, %v313
        %v333 = vand.u32 %v332, 8388607
        %v334 = vor.u32 %v333, 8388608
        %v335 = vsub.s32 0, %v334
        %v336 = vadd.s32 %v331, 1
        %vm337 = vcmp.gt.s32.totalorder %v336, 0
        %v338 = vsel %vm337, %v336, 0
        %v339 = vshrl.u32 %v338, 5
        %v340 = vand.u32 %v338, 31
        %v341 = vsub.s32 32, %v340
        %v342 = vshrl.u32 683565275, %v341
        %v343 = vshll.u32 683565275, %v340
        %v344 = vshrl.u32 2475754826, %v341
        %v345 = vor.u32 %v343, %v344
        %v346 = vshll.u32 2475754826, %v340
        %v347 = vshrl.u32 2131351028, %v341
        %v348 = vor.u32 %v346, %v347
        %v349 = vshll.u32 2131351028, %v340
        %v350 = vshrl.u32 2102212464, %v341
        %v351 = vor.u32 %v349, %v350
        %v352 = vshll.u32 2102212464, %v340
        %v353 = vshrl.u32 920167782, %v341
        %v354 = vor.u32 %v352, %v353
        %v355 = vshll.u32 920167782, %v340
        %v356 = vshrl.u32 1326507024, %v341
        %v357 = vor.u32 %v355, %v356
        %vm358 = vcmp.lt.s32.totalorder %v339, 1
        %vm359 = vcmp.lt.s32.totalorder %v339, 2
        %vm360 = vcmp.lt.s32.totalorder %v339, 3
        %vm361 = vcmp.lt.s32.totalorder %v339, 4
        %v362 = vsel %vm358, %v342, %v345
        %v363 = vsel %vm361, %v351, 2102212464
        %v364 = vsel %vm360, %v348, %v363
        %v365 = vsel %vm359, %v362, %v364
        %v366 = vsel %vm358, %v345, %v348
        %v367 = vsel %vm361, %v354, 920167782
        %v368 = vsel %vm360, %v351, %v367
        %v369 = vsel %vm359, %v366, %v368
        %v370 = vsel %vm358, %v348, %v351
        %v371 = vsel %vm361, %v357, 1326507024
        %v372 = vsel %vm360, %v354, %v371
        %v373 = vsel %vm359, %v370, %v372
        %v374 = vshll.u32 %v334, 8
        %v375 = vmul.u32.u64.compose %v374, %v373
        %v376 = vextract.low.u32 %v375
        %v377 = vextract.high.u32 %v375
        %v378 = vmul.u32.u64.compose %v374, %v369
        %v379 = vextract.low.u32 %v378
        %v380 = vextract.high.u32 %v378
        %v381 = vmul.u32 %v374, %v365
        %v382 = vadd.s32 %v377, %v379
        %vm383 = vc.u32 %v377, %v379
        %v384 = vadd.s32 %v380, 1
        %v385 = vsel %vm383, %v384, %v380
        %v386 = vadd.s32 %v381, %v385
        %v387 = vadd.s32 %v386, 536870912
        %v388 = vshrl.u32 %v387, 30
        %v389 = vshll.u32 %v388, 30
        %v390 = vsub.s32 %v386, %v389
        %vm391 = vcmp.lt.s32.totalorder %v390, 0
        %v392 = vsub.s32 0, %v390
        %v393 = vsel %vm391, %v392, %v390
        %v394 = vclz %v393
        %v395 = vsub.s32 %v394, 2
        %vm396 = vcmp.gt.s32.totalorder 0, %v395
        %v397 = vsel %vm396, 0, %v395
        %v398 = vsub.s32 32, %v397
        %v399 = vshll.u32 %v390, %v397
        %v400 = vshrl.u32 %v382, %v398
        %v401 = vor.u32 %v399, %v400
        %v402 = vsub.s32 4294967266, %v397
        %v403 = vadd.s32 %v402, 127
        %v404 = vshll.u32 %v403, 23
        %v405 = vor.u32 4788187, %v404
        %v406 = vand.u32 2147483647, %v405
        %v408 = vcvt.s32.f32 %v401
        %v409 = vmul.f32 %v408, %v406
        %v410 = vxor.u32 %v409, 2147483648
        %v411 = vsel %vm328, %v410, %v409
        %v412 = vsub.s32 4, %v388
        %v413 = vsel %vm328, %v412, %v388
        %v414 = vsel %vm327, %v313, %v411
        %v415 = vsel %vm327, 0, %v413
        %v416 = vcosq.f32.pop %v414
        %v417 = vsinq.f32.pop %v414
        %vm418 = vweird.f32 %v313
        %v419 = vand.u32 %v415, 3
        %vm420 = vcmp.lt.s32.totalorder %v419, 2
        %vm421 = vcmp.eq.s32.totalorder %v419, 0
        %v422 = vxor.u32 %v417, 2147483648
        %v423 = vsel %vm421, %v416, %v422
        %vm424 = vcmp.eq.s32.totalorder %v419, 2
        %v425 = vxor.u32 %v416, 2147483648
        %v426 = vsel %vm424, %v425, %v417
        %v427 = vsel %vm420, %v423, %v426
        %v428 = vsel %vm418, nan, %v427
        %v429 = vmul.f32 %v428, 2.0
        %v430 = vand.u32 2147483647, %v325
        %vm431 = vcmp.le.f32.partialorder %v430, 0.7853982
        %vm432 = vcmp.lt.s32.totalorder %v325, 0
        %v433 = vand.u32 %v325, 2139095040
        %v434 = vshrl.u32 %v433, 23
        %v435 = vsub.s32 %v434, 127
        %v436 = vand.u32 2147483647, %v325
        %v437 = vand.u32 %v436, 8388607
        %v438 = vor.u32 %v437, 8388608
        %v439 = vsub.s32 0, %v438
        %v440 = vadd.s32 %v435, 1
        %vm441 = vcmp.gt.s32.totalorder %v440, 0
        %v442 = vsel %vm441, %v440, 0
        %v443 = vshrl.u32 %v442, 5
        %v444 = vand.u32 %v442, 31
        %v445 = vsub.s32 32, %v444
        %v446 = vshrl.u32 683565275, %v445
        %v447 = vshll.u32 683565275, %v444
        %v448 = vshrl.u32 2475754826, %v445
        %v449 = vor.u32 %v447, %v448
        %v450 = vshll.u32 2475754826, %v444
        %v451 = vshrl.u32 2131351028, %v445
        %v452 = vor.u32 %v450, %v451
        %v453 = vshll.u32 2131351028, %v444
        %v454 = vshrl.u32 2102212464, %v445
        %v455 = vor.u32 %v453, %v454
        %v456 = vshll.u32 2102212464, %v444
        %v457 = vshrl.u32 920167782, %v445
        %v458 = vor.u32 %v456, %v457
        %v459 = vshll.u32 920167782, %v444
        %v460 = vshrl.u32 1326507024, %v445
        %v461 = vor.u32 %v459, %v460
        %vm462 = vcmp.lt.s32.totalorder %v443, 1
        %vm463 = vcmp.lt.s32.totalorder %v443, 2
        %vm464 = vcmp.lt.s32.totalorder %v443, 3
        %vm465 = vcmp.lt.s32.totalorder %v443, 4
        %v466 = vsel %vm462, %v446, %v449
        %v467 = vsel %vm465, %v455, 2102212464
        %v468 = vsel %vm464, %v452, %v467
        %v469 = vsel %vm463, %v466, %v468
        %v470 = vsel %vm462, %v449, %v452
        %v471 = vsel %vm465, %v458, 920167782
        %v472 = vsel %vm464, %v455, %v471
        %v473 = vsel %vm463, %v470, %v472
        %v474 = vsel %vm462, %v452, %v455
        %v475 = vsel %vm465, %v461, 1326507024
        %v476 = vsel %vm464, %v458, %v475
        %v477 = vsel %vm463, %v474, %v476
        %v478 = vshll.u32 %v438, 8
        %v479 = vmul.u32.u64.compose %v478, %v477
        %v480 = vextract.low.u32 %v479
        %v481 = vextract.high.u32 %v479
        %v482 = vmul.u32.u64.compose %v478, %v473
        %v483 = vextract.low.u32 %v482
        %v484 = vextract.high.u32 %v482
        %v485 = vmul.u32 %v478, %v469
        %v486 = vadd.s32 %v481, %v483
        %vm487 = vc.u32 %v481, %v483
        %v488 = vadd.s32 %v484, 1
        %v489 = vsel %vm487, %v488, %v484
        %v490 = vadd.s32 %v485, %v489
        %v491 = vadd.s32 %v490, 536870912
        %v492 = vshrl.u32 %v491, 30
        %v493 = vshll.u32 %v492, 30
        %v494 = vsub.s32 %v490, %v493
        %vm495 = vcmp.lt.s32.totalorder %v494, 0
        %v496 = vsub.s32 0, %v494
        %v497 = vsel %vm495, %v496, %v494
        %v498 = vclz %v497
        %v499 = vsub.s32 %v498, 2
        %vm500 = vcmp.gt.s32.totalorder 0, %v499
        %v501 = vsel %vm500, 0, %v499
        %v502 = vsub.s32 32, %v501
        %v503 = vshll.u32 %v494, %v501
        %v504 = vshrl.u32 %v486, %v502
        %v505 = vor.u32 %v503, %v504
        %v506 = vsub.s32 4294967266, %v501
        %v507 = vadd.s32 %v506, 127
        %v508 = vshll.u32 %v507, 23
        %v509 = vor.u32 4788187, %v508
        %v510 = vand.u32 2147483647, %v509
        %v512 = vcvt.s32.f32 %v505
        %v513 = vmul.f32 %v512, %v510
        %v514 = vxor.u32 %v513, 2147483648
        %v515 = vsel %vm432, %v514, %v513
        %v516 = vsub.s32 4, %v492
        %v517 = vsel %vm432, %v516, %v492
        %v518 = vsel %vm431, %v325, %v515
        %v519 = vsel %vm431, 0, %v517
        %v520 = vcosq.f32.pop %v518
        %v521 = vsinq.f32.pop %v518
        %vm522 = vweird.f32 %v325
        %v523 = vadd.s32 %v519, 3
        %v524 = vand.u32 %v523, 3
        %vm525 = vcmp.lt.s32.totalorder %v524, 2
        %vm526 = vcmp.eq.s32.totalorder %v524, 0
        %v527 = vxor.u32 %v521, 2147483648
        %v528 = vsel %vm526, %v520, %v527
        %vm529 = vcmp.eq.s32.totalorder %v524, 2
        %v530 = vxor.u32 %v520, 2147483648
        %v531 = vsel %vm529, %v530, %v521
        %v532 = vsel %vm525, %v528, %v531
        %v533 = vsel %vm522, nan, %v532
        %535 = vset.pattern.permute.xlu0 0
        %536 = vperm.xlu0 %535, %v325
        %v537 = vpop.permute.xlu0 %536
        %v539 = vadd.f32 %v313, %v537
        %v540 = vand.u32 2147483647, %v539
        %vm541 = vcmp.le.f32.partialorder %v540, 0.7853982
        %vm542 = vcmp.lt.s32.totalorder %v539, 0
        %v543 = vand.u32 %v539, 2139095040
        %v544 = vshrl.u32 %v543, 23
        %v545 = vsub.s32 %v544, 127
        %v546 = vand.u32 2147483647, %v539
        %v547 = vand.u32 %v546, 8388607
        %v548 = vor.u32 %v547, 8388608
        %v549 = vsub.s32 0, %v548
        %v550 = vadd.s32 %v545, 1
        %vm551 = vcmp.gt.s32.totalorder %v550, 0
        %v552 = vsel %vm551, %v550, 0
        %v553 = vshrl.u32 %v552, 5
        %v554 = vand.u32 %v552, 31
        %v555 = vsub.s32 32, %v554
        %v556 = vshrl.u32 683565275, %v555
        %v557 = vshll.u32 683565275, %v554
        %v558 = vshrl.u32 2475754826, %v555
        %v559 = vor.u32 %v557, %v558
        %v560 = vshll.u32 2475754826, %v554
        %v561 = vshrl.u32 2131351028, %v555
        %v562 = vor.u32 %v560, %v561
        %v563 = vshll.u32 2131351028, %v554
        %v564 = vshrl.u32 2102212464, %v555
        %v565 = vor.u32 %v563, %v564
        %v566 = vshll.u32 2102212464, %v554
        %v567 = vshrl.u32 920167782, %v555
        %v568 = vor.u32 %v566, %v567
        %v569 = vshll.u32 920167782, %v554
        %v570 = vshrl.u32 1326507024, %v555
        %v571 = vor.u32 %v569, %v570
        %vm572 = vcmp.lt.s32.totalorder %v553, 1
        %vm573 = vcmp.lt.s32.totalorder %v553, 2
        %vm574 = vcmp.lt.s32.totalorder %v553, 3
        %vm575 = vcmp.lt.s32.totalorder %v553, 4
        %v576 = vsel %vm572, %v556, %v559
        %v577 = vsel %vm575, %v565, 2102212464
        %v578 = vsel %vm574, %v562, %v577
        %v579 = vsel %vm573, %v576, %v578
        %v580 = vsel %vm572, %v559, %v562
        %v581 = vsel %vm575, %v568, 920167782
        %v582 = vsel %vm574, %v565, %v581
        %v583 = vsel %vm573, %v580, %v582
        %v584 = vsel %vm572, %v562, %v565
        %v585 = vsel %vm575, %v571, 1326507024
        %v586 = vsel %vm574, %v568, %v585
        %v587 = vsel %vm573, %v584, %v586
        %v588 = vshll.u32 %v548, 8
        %v589 = vmul.u32.u64.compose %v588, %v587
        %v590 = vextract.low.u32 %v589
        %v591 = vextract.high.u32 %v589
        %v592 = vmul.u32.u64.compose %v588, %v583
        %v593 = vextract.low.u32 %v592
        %v594 = vextract.high.u32 %v592
        %v595 = vmul.u32 %v588, %v579
        %v596 = vadd.s32 %v591, %v593
        %vm597 = vc.u32 %v591, %v593
        %v598 = vadd.s32 %v594, 1
        %v599 = vsel %vm597, %v598, %v594
        %v600 = vadd.s32 %v595, %v599
        %v601 = vadd.s32 %v600, 536870912
        %v602 = vshrl.u32 %v601, 30
        %v603 = vshll.u32 %v602, 30
        %v604 = vsub.s32 %v600, %v603
        %vm605 = vcmp.lt.s32.totalorder %v604, 0
        %v606 = vsub.s32 0, %v604
        %v607 = vsel %vm605, %v606, %v604
        %v608 = vclz %v607
        %v609 = vsub.s32 %v608, 2
        %vm610 = vcmp.gt.s32.totalorder 0, %v609
        %v611 = vsel %vm610, 0, %v609
        %v612 = vsub.s32 32, %v611
        %v613 = vshll.u32 %v604, %v611
        %v614 = vshrl.u32 %v596, %v612
        %v615 = vor.u32 %v613, %v614
        %v616 = vsub.s32 4294967266, %v611
        %v617 = vadd.s32 %v616, 127
        %v618 = vshll.u32 %v617, 23
        %v619 = vor.u32 4788187, %v618
        %v620 = vand.u32 2147483647, %v619
        %v622 = vcvt.s32.f32 %v615
        %v623 = vmul.f32 %v622, %v620
        %v624 = vxor.u32 %v623, 2147483648
        %v625 = vsel %vm542, %v624, %v623
        %v626 = vsub.s32 4, %v602
        %v627 = vsel %vm542, %v626, %v602
        %v628 = vsel %vm541, %v539, %v625
        %v629 = vsel %vm541, 0, %v627
        %v630 = vcosq.f32.pop %v628
        %v631 = vsinq.f32.pop %v628
        %vm632 = vweird.f32 %v539
        %v633 = vadd.s32 %v629, 3
        %v634 = vand.u32 %v633, 3
        %vm635 = vcmp.lt.s32.totalorder %v634, 2
        %vm636 = vcmp.eq.s32.totalorder %v634, 0
        %v637 = vxor.u32 %v631, 2147483648
        %v638 = vsel %vm636, %v630, %v637
        %vm639 = vcmp.eq.s32.totalorder %v634, 2
        %v640 = vxor.u32 %v630, 2147483648
        %v641 = vsel %vm639, %v640, %v631
        %v642 = vsel %vm635, %v638, %v641
        %v643 = vsel %vm632, nan, %v642
        %s644 = sld [smem:[#allocation4]]
        %v645 = vstv %s644
        %v646 = vmul.f32 %v645, %v643
        %v647 = vmul.f32 %v429, %v643
        %649 = vset.pattern.permute.xlu0 0
        %650 = vperm.xlu0 %649, %v533
        %v651 = vpop.permute.xlu0 %650
        %v653 = vsub.f32 %v647, %v651
        %s654 = sld [smem:[#allocation4 + $0x1]]
        %v655 = vstv %s654
        %v656 = vmul.f32 %v655, %v653
        %v657 = vadd.f32 %v646, %v656
        %v658 = vmul.f32 %v429, %v653
        %v659 = vsub.f32 %v658, %v643
        %s660 = sld [smem:[#allocation4 + $0x2]]
        %v661 = vstv %s660
        %v662 = vmul.f32 %v661, %v659
        %v663 = vadd.f32 %v657, %v662
        %v664 = vmul.f32 %v429, %v659
        %v665 = vsub.f32 %v664, %v653
        %s666 = sld [smem:[#allocation4 + $0x3]]
        %v667 = vstv %s666
        %v668 = vmul.f32 %v667, %v665
        %v669 = vadd.f32 %v663, %v668
        %v670 = vmul.f32 %v429, %v665
        %v671 = vsub.f32 %v670, %v659
        %s672 = sld [smem:[#allocation4 + $0x4]]
        %v673 = vstv %s672
        %v674 = vmul.f32 %v673, %v671
        %v675 = vadd.f32 %v669, %v674
        %v676 = vmul.f32 %v429, %v671
        %v677 = vsub.f32 %v676, %v665
        %s678 = sld [smem:[#allocation4 + $0x5]]
        %v679 = vstv %s678
        %v680 = vmul.f32 %v679, %v677
        %v681 = vadd.f32 %v675, %v680
        %v682 = vmul.f32 %v429, %v677
        %v683 = vsub.f32 %v682, %v671
        %s684 = sld [smem:[#allocation4 + $0x6]]
        %v685 = vstv %s684
        %v686 = vmul.f32 %v685, %v683
        %v687 = vadd.f32 %v681, %v686
        %v688 = vmul.f32 %v429, %v683
        %v689 = vsub.f32 %v688, %v677
        %s690 = sld [smem:[#allocation4 + $0x7]]
        %v691 = vstv %s690
        %v692 = vmul.f32 %v691, %v689
        %v693 = vadd.f32 %v687, %v692
        %s694 = sld [smem:[#allocation5]]
        %v695 = vld [vmem:[%s215] sm:$0xff]
        %v696 = vstv %s694
        %v697 = vmul.f32 %v696, %v695
        %v698 = vadd.f32 %v693, %v697
        %s699 = sld [smem:[#allocation5 + $0x1]]
        %v700 = vstv %s699
        %v701 = vadd.f32 %v698, %v700
        %v702 = vtanh.pop %v701
        %703 = vst [vmem:[%s248] sm:$0xff] %v702
        %s704 = sand.u32 %s136, 1
        %s705 = scalar_lea.sflag [#allocation8], %s704
        %s706 = sand.u32 %s136, 1
        %s707 = smul.addr %s706, 8
        %s708 = scalar_lea.vmem [#allocation9], %s707
        // Predicated region
        $region41: #{tpu_custom_call.1} parent=31 // pred_check
          %p709 = pneg %p146
        $region42: #{tpu_custom_call.1} parent=31 // pred_check_branch
          %711 = sbr.rel (%p709) target = $region44
        $region43: #{tpu_custom_call.1} parent=31 // pred_region
          %s713 = ssub.s32 128, 128
          %714 = vsyncadd %s705, %s713
          %s715 = sadd.s32 %s37, %s36
          %s716 = smul.addr %s715, 128
          %s717 = scalar_lea.hbm %s5, %s716
          %s719 = sshll.u32 %s708, 4
          %s720 = int_to_ptr.vmem [resolvable:$true] %s719
          %722 = dma.vmem_to_hbm [thread:$0]  %s720, 128, %s717, %s705
        $region44: #{tpu_custom_call.1} parent=31 // pred_fallthru
          _
      $region32: #{tpu_custom_call.1} parent=5 // pred_fallthru
        _
      %p723 = scmp.le.s32.totalorder 2, %s27
      // Predicated region
      $region45: #{tpu_custom_call.1} parent=5 // pred_check
        %p724 = pneg %p723
      $region46: #{tpu_custom_call.1} parent=5 // pred_check_branch
        %726 = sbr.rel (%p724) target = $region48
      $region47: #{tpu_custom_call.1} parent=5 // pred_region
        %s727 = ssub.s32 %s27, 2
        // Predicated region
        $region49: #{tpu_custom_call.1} parent=47 // pred_check
          %p728 = pneg %p152
        $region50: #{tpu_custom_call.1} parent=47 // pred_check_branch
          %730 = sbr.rel (%p728) target = $region52
        $region51: #{tpu_custom_call.1} parent=47 // pred_region
          %s731 = sand.u32 %s137, 1
          %s732 = scalar_lea.sflag [#allocation8], %s731
          %s733 = sand.u32 %s137, 1
          %s734 = smul.addr %s733, 8
          %s735 = scalar_lea.vmem [#allocation9], %s734
          %736 = dma.done %s732, 128
        $region52: #{tpu_custom_call.1} parent=47 // pred_fallthru
          _
      $region48: #{tpu_custom_call.1} parent=5 // pred_fallthru
        _
    $region6: #{tpu_custom_call.1} parent=1 // loop_footer
      %s31 = sadd.s32 1, %s27
    $region7: #{tpu_custom_call.1} parent=1 // loop_footer_branch
      %26 = sbr.rel target = $region3
    $region8: #{tpu_custom_call.1} parent=1 // loop_exit
      _
    %737 = vsyncpa [#allocation7], 1
    %s738 = scalar_lea.sflag [#allocation7], 1
    %739 = vsyncpa %s738, 1
    %740 = vsyncpa [#allocation8], 1
    %s741 = scalar_lea.sflag [#allocation8], 1
    %742 = vsyncpa %s741, 1

</llo_original>
